<compile_context>
chip_gen: v6e
topology: v6e:2x2x1
jax: 0.10.0
libtpu: 0.0.40
codegen_flags: <defaults>
</compile_context>

<pallas_src>
import functools
import numpy as np
import jax
import jax.numpy as jnp
from jax.experimental import pallas as pl
from jax.experimental.pallas import tpu as pltpu

HIDDEN = 200
HP = 256  # hidden width padded to full 128-lane MXU tiles


def _round_up(a, m):
    return (a + m - 1) // m * m


# ----------------------------------------------------------------- kernel ---
def net_two_kernel(x_ref, w1_ref, b1_ref, w2_ref, b2_ref, w3_ref, b3_ref,
                   fw_ref, fb_ref, onehot_ref, out_ref, *, N, a_off, y_off):
    # fc1..fc3: bf16 MXU inputs, f32 accumulation, f32 bias + ReLU.
    h1 = jnp.maximum(
        jnp.dot(x_ref[...].astype(jnp.bfloat16), w1_ref[...],
                preferred_element_type=jnp.float32) + b1_ref[...], 0.0)
    h2 = jnp.maximum(
        jnp.dot(h1.astype(jnp.bfloat16), w2_ref[...],
                preferred_element_type=jnp.float32) + b2_ref[...], 0.0)
    h3 = jnp.maximum(
        jnp.dot(h2.astype(jnp.bfloat16), w3_ref[...],
                preferred_element_type=jnp.float32) + b3_ref[...], 0.0)

    # Fused structural matmul kept in f32 (path/cumsum + Levy-area precision).
    # Columns: [ path (interleaved) | lvl1 | area(=0) | A=[.5*s1|-.5*s2] | Y=[y2|y1] | 0 ]
    slab = jnp.dot(h3, fw_ref[...], preferred_element_type=jnp.float32) + fb_ref[...]

    # Depth-2 log-signature (Levy area): scale/sign already folded into A host-side.
    a_blk = slab[:, a_off:a_off + 2 * N]
    y_blk = slab[:, y_off:y_off + 2 * N]
    area = jnp.sum(a_blk * y_blk, axis=-1, keepdims=True)

    # Area column of fw/fb is all-zero by construction -> blend via one-hot add,
    # single unmasked lane-dense store.
    out_ref[...] = slab + area * onehot_ref[...]


# ------------------------------------------------------------- parameters ---
def make_params(key, input_dim, N):
    """Deterministic params mimicking nn.Linear default init (uniform +-1/sqrt(fan_in))."""
    def linear(k, fan_in, fan_out):
        kw, kb = jax.random.split(k)
        bound = 1.0 / np.sqrt(fan_in)
        w = jax.random.uniform(kw, (fan_in, fan_out), jnp.float32, -bound, bound)
        b = jax.random.uniform(kb, (1, fan_out), jnp.float32, -bound, bound)
        return w, b

    k1, k2, k3, k4 = jax.random.split(key, 4)
    w1, b1 = linear(k1, input_dim, HIDDEN)
    w2, b2 = linear(k2, HIDDEN, HIDDEN)
    w3, b3 = linear(k3, HIDDEN, N * 10)
    w4, b4 = linear(k4, 10, 2)
    return (w1, b1, w2, b2, w3, b3, w4, b4)


def pack_params(params, input_dim, N):
    """Build (ONCE) padded weights and the fused structural matrix as device arrays."""
    w1, b1, w2, b2, w3, b3, w4, b4 = [np.asarray(p, np.float32) for p in params]
    h3p = _round_up(N * 10, 128)

    path_w = 2 * (N + 1)
    area_col = path_w + 2
    a_off = _round_up(path_w + 3, 8)          # A block, 8-aligned
    y_off = _round_up(a_off + 2 * N, 8)       # Y block, 8-aligned
    out_w = _round_up(y_off + 2 * N, 128)

    def pad(a, shape):
        out = np.zeros(shape, np.float32)
        out[:a.shape[0], :a.shape[1]] = a
        return out

    # Block-diagonal fc4: y (per-step increments, interleaved) = h3 @ W4big + b4big
    w4big = np.zeros((N * 10, N * 2), np.float32)
    for n in range(N):
        w4big[n * 10:(n + 1) * 10, n * 2:(n + 1) * 2] = w4
    b4big = np.tile(b4.reshape(1, 2), (1, N)).astype(np.float32)

    # Cumsum + zero-prepend matrix: path (interleaved) = y @ C2
    c2 = np.zeros((N * 2, (N + 1) * 2), np.float32)
    for m in range(N):
        for n in range(m, N):
            c2[m * 2 + 0, (n + 1) * 2 + 0] = 1.0
            c2[m * 2 + 1, (n + 1) * 2 + 1] = 1.0

    # Layout map T: y (interleaved) -> output slab columns.
    T = np.zeros((N * 2, out_w), np.float32)
    T[:, :path_w] = c2                                  # path, interleaved (step-major)
    T[:, path_w:path_w + 2] = c2[:, -2:]                # level-1 = last path point
    for j in range(N):
        # A block: [0.5*start1 | -0.5*start2]  (0.5 scale and sign folded host-side)
        T[:, a_off + j] = 0.5 * c2[:, 2 * j]
        T[:, a_off + N + j] = -0.5 * c2[:, 2 * j + 1]
        # Y block: [y2 | y1]
        T[2 * j + 1, y_off + j] = 1.0
        T[2 * j, y_off + N + j] = 1.0

    fw = pad(w4big @ T, (h3p, out_w))                   # fused weight, f32 (precision)
    fb = (b4big @ T).reshape(1, out_w)                  # fused bias, f32

    onehot = np.zeros((1, out_w), np.float32)           # area-column selector
    onehot[0, area_col] = 1.0

    packed = (
        jnp.asarray(pad(w1, (input_dim, HP)), jnp.bfloat16), jnp.asarray(pad(b1, (1, HP))),
        jnp.asarray(pad(w2, (HP, HP)), jnp.bfloat16),        jnp.asarray(pad(b2, (1, HP))),
        jnp.asarray(pad(w3, (HP, h3p)), jnp.bfloat16),       jnp.asarray(pad(b3, (1, h3p))),
        jnp.asarray(fw),                                      jnp.asarray(fb),
        jnp.asarray(onehot),
    )
    meta = dict(N=N, path_w=path_w, area_col=area_col,
                a_off=a_off, y_off=y_off, out_w=out_w, h3p=h3p)
    return packed, meta


# ----------------------------------------------------------------- wrapper --
def _choose_batch_tiling(B, tb):
    """Balanced batch tiles; even grid (>=2) when B allows (v7x has 2 TensorCores)."""
    num_tiles = max(1, -(-B // tb))
    if num_tiles % 2 == 1 and B > 8 * num_tiles:
        num_tiles += 1
    rows = -(-B // num_tiles)
    align = 16 if rows >= 16 else 8           # 16-row sublane packing for bf16 activations
    return _round_up(rows, align), num_tiles


def net_two_forward(x, packed, meta, *, tb=1024):
    B, input_dim = x.shape
    N, out_w = meta["N"], meta["out_w"]

    TB, num_tiles = _choose_batch_tiling(B, tb)
    Bp = TB * num_tiles
    if Bp != B:
        x = jnp.pad(x, ((0, Bp - B), (0, 0)))

    kernel = functools.partial(net_two_kernel, N=N,
                               a_off=meta["a_off"], y_off=meta["y_off"])

    in_specs = [pl.BlockSpec((TB, input_dim), lambda i: (i, 0))]
    # Weights / structural mats: constant index_map -> VMEM-resident across grid steps.
    # (If N grows large, mark these pipeline_mode=pl.Buffered(1) on v7x's 64 MiB VMEM.)
    in_specs += [pl.BlockSpec(w.shape, lambda i: (0, 0)) for w in packed]

    # Explicit scoped-VMEM request with headroom (weights may be double-buffered).
    weight_bytes = sum(int(np.prod(w.shape)) * w.dtype.itemsize for w in packed)
    io_bytes = 2 * TB * input_dim * 4 + 2 * TB * out_w * 4
    act_bytes = TB * (3 * HP + meta["h3p"] + out_w) * 4
    vmem_limit = int(max(32 << 20, 2 * weight_bytes + io_bytes + act_bytes + (4 << 20)))

    slab = pl.pallas_call(
        kernel,
        out_shape=jax.ShapeDtypeStruct((Bp, out_w), jnp.float32),
        grid=(num_tiles,),
        in_specs=in_specs,
        out_specs=pl.BlockSpec((TB, out_w), lambda i: (i, 0)),
        compiler_params=pltpu.CompilerParams(
            dimension_semantics=("parallel",),
            vmem_limit_bytes=vmem_limit),
    )(x, *packed)

    slab = slab[:B]
    path_w = meta["path_w"]
    path = slab[:, :path_w].reshape(B, N + 1, 2)       # (B, N+1, 2)
    sig = slab[:, path_w:path_w + 3]                   # [dX1, dX2, Levy area]
    # TODO(synk): signatory.LogSignature for depth > 2 has no clean closed-form
    # kernel; only order == 2 is implemented here.
    return path, sig


# --------------------------------------------------------------- reference --
def reference_forward(x, params, N, matmul_dtype=jnp.float32):
    """Pure-JAX reference matching the PyTorch semantics (order == 2 logsig).

    `matmul_dtype=jnp.bfloat16` mirrors the kernel's MXU input precision
    (f32 accumulation everywhere) for a tight numerical comparison.
    """
    B = x.shape[0]
    w1, b1, w2, b2, w3, b3, w4, b4 = params

    def mm(a, w):
        return jnp.dot(a.astype(matmul_dtype), w.astype(matmul_dtype),
                       preferred_element_type=jnp.float32)

    h1 = jax.nn.relu(mm(x, w1) + b1)
    h2 = jax.nn.relu(mm(h1, w2) + b2)
    h3 = jax.nn.relu(mm(h2, w3) + b3)
    y = h3.reshape(B, N, 10) @ w4 + b4[0]                    # (B, N, 2), f32
    cum = jnp.cumsum(y, axis=1)
    path = jnp.concatenate([jnp.zeros((B, 1, 2), jnp.float32), cum], axis=1)
    incr = path[:, 1:, :] - path[:, :-1, :]
    start = path[:, :-1, :]
    lvl1 = path[:, -1, :]
    area = 0.5 * jnp.sum(start[..., 0] * incr[..., 1] - start[..., 1] * incr[..., 0], axis=1)
    sig = jnp.concatenate([lvl1, area[:, None]], axis=1)
    return path, sig


if __name__ == "__main__":
    B, input_dim, N, order = 8, 32, 8, 2

    key = jax.random.PRNGKey(0)
    kx, kp = jax.random.split(key)
    x = jax.random.normal(kx, (B, input_dim), jnp.float32)
    params = make_params(kp, input_dim, N)

    packed, meta = pack_params(params, input_dim, N)   # structural mats built once

    path, sig = net_two_forward(x, packed, meta)
    path, sig = jax.block_until_ready((path, sig))

    # Tight check against a reference with matching (bf16-in, f32-acc) matmuls.
    ref_path, ref_sig = reference_forward(x, params, N, matmul_dtype=jnp.bfloat16)
    assert np.allclose(np.asarray(path), np.asarray(ref_path), atol=2e-3, rtol=2e-3)
    assert np.allclose(np.asarray(sig), np.asarray(ref_sig), atol=2e-3, rtol=2e-3)

    # Loose sanity check against the pure-f32 reference (bounds bf16 input error).
    f32_path, f32_sig = reference_forward(x, params, N, matmul_dtype=jnp.float32)
    assert np.allclose(np.asarray(path), np.asarray(f32_path), atol=1e-1, rtol=1e-1)
    assert np.allclose(np.asarray(sig), np.asarray(f32_sig), atol=1e-1, rtol=1e-1)

    print("KERNEL_OK")
</pallas_src>

<mosaic_0001>
module attributes {stable_mosaic.version = 11 : i64} {
  func.func @net_two_kernel(%arg0: i32, %arg1: memref<8x32xf32, #tpu.memory_space<vmem>>, %arg2: memref<32x256xbf16, #tpu.memory_space<vmem>>, %arg3: memref<1x256xf32, #tpu.memory_space<vmem>>, %arg4: memref<256x256xbf16, #tpu.memory_space<vmem>>, %arg5: memref<1x256xf32, #tpu.memory_space<vmem>>, %arg6: memref<256x128xbf16, #tpu.memory_space<vmem>>, %arg7: memref<1x128xf32, #tpu.memory_space<vmem>>, %arg8: memref<128x128xf32, #tpu.memory_space<vmem>>, %arg9: memref<1x128xf32, #tpu.memory_space<vmem>>, %arg10: memref<1x128xf32, #tpu.memory_space<vmem>>, %arg11: memref<8x128xf32, #tpu.memory_space<vmem>>) attributes {dimension_semantics = [#tpu.dimension_semantics<parallel>], iteration_bounds = array<i64: 1>, scalar_prefetch = 0 : i64, scratch_operands = 0 : i64, tpu.core_type = #tpu.core_type<tc>, window_params = [{transform_indices = @transform_0, window_bounds = array<i64: 8, 32>}, {pipeline_mode = #tpu.pipeline_mode<synchronous>, transform_indices = @transform_1, window_bounds = array<i64: 32, 256>}, {pipeline_mode = #tpu.pipeline_mode<synchronous>, transform_indices = @transform_2, window_bounds = array<i64: 1, 256>}, {pipeline_mode = #tpu.pipeline_mode<synchronous>, transform_indices = @transform_3, window_bounds = array<i64: 256, 256>}, {pipeline_mode = #tpu.pipeline_mode<synchronous>, transform_indices = @transform_4, window_bounds = array<i64: 1, 256>}, {pipeline_mode = #tpu.pipeline_mode<synchronous>, transform_indices = @transform_5, window_bounds = array<i64: 256, 128>}, {pipeline_mode = #tpu.pipeline_mode<synchronous>, transform_indices = @transform_6, window_bounds = array<i64: 1, 128>}, {pipeline_mode = #tpu.pipeline_mode<synchronous>, transform_indices = @transform_7, window_bounds = array<i64: 128, 128>}, {pipeline_mode = #tpu.pipeline_mode<synchronous>, transform_indices = @transform_8, window_bounds = array<i64: 1, 128>}, {pipeline_mode = #tpu.pipeline_mode<synchronous>, transform_indices = @transform_9, window_bounds = array<i64: 1, 128>}, {transform_indices = @transform_10, window_bounds = array<i64: 8, 128>}]} {
    %c0 = arith.constant 0 : index
    %c0_0 = arith.constant 0 : index
    %0 = vector.load %arg1[%c0, %c0_0] : memref<8x32xf32, #tpu.memory_space<vmem>>, vector<8x32xf32>
    %1 = arith.truncf %0 : vector<8x32xf32> to vector<8x32xbf16>
    %c0_1 = arith.constant 0 : index
    %c0_2 = arith.constant 0 : index
    %2 = vector.load %arg2[%c0_1, %c0_2] : memref<32x256xbf16, #tpu.memory_space<vmem>>, vector<32x256xbf16>
    %cst = arith.constant dense<0.000000e+00> : vector<8x256xf32>
    %3 = tpu.matmul %1, %2, %cst {dimension_numbers = #tpu.dot_dimension_numbers<[1], [0], [0], [1], [0, 0, 1, 1], [], []>} : vector<8x32xbf16>, vector<32x256xbf16>, vector<8x256xf32> -> vector<8x256xf32>
    %c0_3 = arith.constant 0 : index
    %c0_4 = arith.constant 0 : index
    %4 = vector.load %arg3[%c0_3, %c0_4] : memref<1x256xf32, #tpu.memory_space<vmem>>, vector<1x256xf32>
    %5 = vector.broadcast %4 : vector<1x256xf32> to vector<8x256xf32>
    %6 = arith.addf %3, %5 : vector<8x256xf32>
    %cst_5 = arith.constant 0.000000e+00 : f32
    %7 = vector.broadcast %cst_5 : f32 to vector<8x256xf32>
    %8 = arith.maximumf %6, %7 : vector<8x256xf32>
    %9 = arith.truncf %8 : vector<8x256xf32> to vector<8x256xbf16>
    %c0_6 = arith.constant 0 : index
    %c0_7 = arith.constant 0 : index
    %10 = vector.load %arg4[%c0_6, %c0_7] : memref<256x256xbf16, #tpu.memory_space<vmem>>, vector<256x256xbf16>
    %cst_8 = arith.constant dense<0.000000e+00> : vector<8x256xf32>
    %11 = tpu.matmul %9, %10, %cst_8 {dimension_numbers = #tpu.dot_dimension_numbers<[1], [0], [0], [1], [0, 0, 1, 1], [], []>} : vector<8x256xbf16>, vector<256x256xbf16>, vector<8x256xf32> -> vector<8x256xf32>
    %c0_9 = arith.constant 0 : index
    %c0_10 = arith.constant 0 : index
    %12 = vector.load %arg5[%c0_9, %c0_10] : memref<1x256xf32, #tpu.memory_space<vmem>>, vector<1x256xf32>
    %13 = vector.broadcast %12 : vector<1x256xf32> to vector<8x256xf32>
    %14 = arith.addf %11, %13 : vector<8x256xf32>
    %cst_11 = arith.constant 0.000000e+00 : f32
    %15 = vector.broadcast %cst_11 : f32 to vector<8x256xf32>
    %16 = arith.maximumf %14, %15 : vector<8x256xf32>
    %17 = arith.truncf %16 : vector<8x256xf32> to vector<8x256xbf16>
    %c0_12 = arith.constant 0 : index
    %c0_13 = arith.constant 0 : index
    %18 = vector.load %arg6[%c0_12, %c0_13] : memref<256x128xbf16, #tpu.memory_space<vmem>>, vector<256x128xbf16>
    %cst_14 = arith.constant dense<0.000000e+00> : vector<8x128xf32>
    %19 = tpu.matmul %17, %18, %cst_14 {dimension_numbers = #tpu.dot_dimension_numbers<[1], [0], [0], [1], [0, 0, 1, 1], [], []>} : vector<8x256xbf16>, vector<256x128xbf16>, vector<8x128xf32> -> vector<8x128xf32>
    %c0_15 = arith.constant 0 : index
    %c0_16 = arith.constant 0 : index
    %20 = vector.load %arg7[%c0_15, %c0_16] : memref<1x128xf32, #tpu.memory_space<vmem>>, vector<1x128xf32>
    %21 = vector.broadcast %20 : vector<1x128xf32> to vector<8x128xf32>
    %22 = arith.addf %19, %21 : vector<8x128xf32>
    %cst_17 = arith.constant 0.000000e+00 : f32
    %23 = vector.broadcast %cst_17 : f32 to vector<8x128xf32>
    %24 = arith.maximumf %22, %23 : vector<8x128xf32>
    %c0_18 = arith.constant 0 : index
    %c0_19 = arith.constant 0 : index
    %25 = vector.load %arg8[%c0_18, %c0_19] : memref<128x128xf32, #tpu.memory_space<vmem>>, vector<128x128xf32>
    %cst_20 = arith.constant dense<0.000000e+00> : vector<8x128xf32>
    %26 = tpu.matmul %24, %25, %cst_20 {dimension_numbers = #tpu.dot_dimension_numbers<[1], [0], [0], [1], [0, 0, 1, 1], [], []>} : vector<8x128xf32>, vector<128x128xf32>, vector<8x128xf32> -> vector<8x128xf32>
    %c0_21 = arith.constant 0 : index
    %c0_22 = arith.constant 0 : index
    %27 = vector.load %arg9[%c0_21, %c0_22] : memref<1x128xf32, #tpu.memory_space<vmem>>, vector<1x128xf32>
    %28 = vector.broadcast %27 : vector<1x128xf32> to vector<8x128xf32>
    %29 = arith.addf %26, %28 : vector<8x128xf32>
    %30 = vector.extract_strided_slice %29 {offsets = [0, 24], sizes = [8, 16], strides = [1, 1]} : vector<8x128xf32> to vector<8x16xf32>
    %31 = vector.extract_strided_slice %29 {offsets = [0, 40], sizes = [8, 16], strides = [1, 1]} : vector<8x128xf32> to vector<8x16xf32>
    %32 = arith.mulf %30, %31 : vector<8x16xf32>
    %cst_23 = arith.constant dense<0.000000e+00> : vector<8xf32>
    %33 = vector.multi_reduction <add>, %32, %cst_23 [1] : vector<8x16xf32> to vector<8xf32>
    %34 = vector.shape_cast %33 : vector<8xf32> to vector<8x1xf32>
    %c0_24 = arith.constant 0 : index
    %c0_25 = arith.constant 0 : index
    %35 = vector.load %arg10[%c0_24, %c0_25] : memref<1x128xf32, #tpu.memory_space<vmem>>, vector<1x128xf32>
    %36 = vector.broadcast %34 : vector<8x1xf32> to vector<8x128xf32>
    %37 = vector.broadcast %35 : vector<1x128xf32> to vector<8x128xf32>
    %38 = arith.mulf %36, %37 : vector<8x128xf32>
    %39 = arith.addf %29, %38 : vector<8x128xf32>
    %c0_26 = arith.constant 0 : index
    %c0_27 = arith.constant 0 : index
    %40 = vector.load %arg11[%c0_26, %c0_27] : memref<8x128xf32, #tpu.memory_space<vmem>>, vector<8x128xf32>
    tpu.vector_store %arg11[%c0_26, %c0_27], %39 {strides = array<i32>} : memref<8x128xf32, #tpu.memory_space<vmem>>, vector<8x128xf32>,
    return
  }
  func.func @transform_0(%arg0: i32) -> (i32, i32) {
    %c0_i32 = arith.constant 0 : i32
    %c0_i32_0 = arith.constant 0 : i32
    return %arg0, %c0_i32 : i32, i32
  }
  func.func @transform_1(%arg0: i32) -> (i32, i32) {
    %c0_i32 = arith.constant 0 : i32
    %c0_i32_0 = arith.constant 0 : i32
    %c0_i32_1 = arith.constant 0 : i32
    return %c0_i32, %c0_i32_0 : i32, i32
  }
  func.func @transform_2(%arg0: i32) -> (i32, i32) {
    %c0_i32 = arith.constant 0 : i32
    %c0_i32_0 = arith.constant 0 : i32
    %c0_i32_1 = arith.constant 0 : i32
    return %c0_i32, %c0_i32_0 : i32, i32
  }
  func.func @transform_3(%arg0: i32) -> (i32, i32) {
    %c0_i32 = arith.constant 0 : i32
    %c0_i32_0 = arith.constant 0 : i32
    %c0_i32_1 = arith.constant 0 : i32
    return %c0_i32, %c0_i32_0 : i32, i32
  }
  func.func @transform_4(%arg0: i32) -> (i32, i32) {
    %c0_i32 = arith.constant 0 : i32
    %c0_i32_0 = arith.constant 0 : i32
    %c0_i32_1 = arith.constant 0 : i32
    return %c0_i32, %c0_i32_0 : i32, i32
  }
  func.func @transform_5(%arg0: i32) -> (i32, i32) {
    %c0_i32 = arith.constant 0 : i32
    %c0_i32_0 = arith.constant 0 : i32
    %c0_i32_1 = arith.constant 0 : i32
    return %c0_i32, %c0_i32_0 : i32, i32
  }
  func.func @transform_6(%arg0: i32) -> (i32, i32) {
    %c0_i32 = arith.constant 0 : i32
    %c0_i32_0 = arith.constant 0 : i32
    %c0_i32_1 = arith.constant 0 : i32
    return %c0_i32, %c0_i32_0 : i32, i32
  }
  func.func @transform_7(%arg0: i32) -> (i32, i32) {
    %c0_i32 = arith.constant 0 : i32
    %c0_i32_0 = arith.constant 0 : i32
    %c0_i32_1 = arith.constant 0 : i32
    return %c0_i32, %c0_i32_0 : i32, i32
  }
  func.func @transform_8(%arg0: i32) -> (i32, i32) {
    %c0_i32 = arith.constant 0 : i32
    %c0_i32_0 = arith.constant 0 : i32
    %c0_i32_1 = arith.constant 0 : i32
    return %c0_i32, %c0_i32_0 : i32, i32
  }
  func.func @transform_9(%arg0: i32) -> (i32, i32) {
    %c0_i32 = arith.constant 0 : i32
    %c0_i32_0 = arith.constant 0 : i32
    %c0_i32_1 = arith.constant 0 : i32
    return %c0_i32, %c0_i32_0 : i32, i32
  }
  func.func @transform_10(%arg0: i32) -> (i32, i32) {
    %c0_i32 = arith.constant 0 : i32
    %c0_i32_0 = arith.constant 0 : i32
    return %arg0, %c0_i32 : i32, i32
  }
}

</mosaic_0001>

<llo_original>
// kernel: tpu_custom_call.1
$region0: #{tpu_custom_call.1}
  #allocation0 [shape = 'u32[]', space=smem, size = 0x4, offset = 0x4, fixed_abs, tag = 'smem constant byte address 0x4 - core index']
  #allocation1 [shape = 'u32[144,128]{1,0:T(1,128)}', space=vmem, size = 0x12000, scoped, tag = 'internal scratch']
  %s0 = inlined_call_operand.hbm [shape: f32[8,32], index: 0, kind: input, shape index: {}]
  %s1 = inlined_call_operand.hbm [shape: bf16[32,256], index: 1, kind: input, shape index: {}]
  %s2 = inlined_call_operand.vmem [shape: f32[1,256], index: 2, kind: input, shape index: {}]
  %s3 = inlined_call_operand.hbm [shape: bf16[256,256], index: 3, kind: input, shape index: {}]
  %s4 = inlined_call_operand.vmem [shape: f32[1,256], index: 4, kind: input, shape index: {}]
  %s5 = inlined_call_operand.hbm [shape: bf16[256,128], index: 5, kind: input, shape index: {}]
  %s6 = inlined_call_operand.vmem [shape: f32[1,128], index: 6, kind: input, shape index: {}]
  %s7 = inlined_call_operand.hbm [shape: f32[128,128], index: 7, kind: input, shape index: {}]
  %s8 = inlined_call_operand.vmem [shape: f32[1,128], index: 8, kind: input, shape index: {}]
  %s9 = inlined_call_operand.vmem [shape: f32[1,128], index: 9, kind: input, shape index: {}]
  %s10 = inlined_call_operand.hbm [shape: f32[8,128], index: 10, kind: output, shape index: {}]
  %s11 = sld [smem:[#allocation0]]
  $region70: #{tpu_custom_call.1} parent=0
    _
  %s13 = ssub.s32 1, %s11
  %s14 = scalar_select 0, %s13, %s11
  $region1: #{tpu_custom_call.1} parent=0
    #allocation2 [shape = 'u8[4096]{0}', space=vmem, size = 0x1000, scoped, tag = 'input window, operand 0, single buffered']
    #allocation3 [shape = 's32[1]{0}', space=sflag, size = 0x4, scoped, tag = 'scoped memory for tpu_custom_call.1']
    #allocation4 [shape = 's32[1]{0}', space=sflag, size = 0x4, scoped, tag = 'scoped memory for tpu_custom_call.1']
    #allocation5 [shape = 'u8[16384]{0}', space=vmem, size = 0x4000, scoped, tag = 'input window, operand 1, single buffered']
    #allocation6 [shape = 's32[1]{0}', space=sflag, size = 0x4, scoped, tag = 'scoped memory for tpu_custom_call.1']
    #allocation7 [shape = 'u8[131072]{0}', space=vmem, size = 0x20000, scoped, tag = 'input window, operand 3, single buffered']
    #allocation8 [shape = 'u8[65536]{0}', space=vmem, size = 0x10000, scoped, tag = 'input window, operand 5, single buffered']
    #allocation9 [shape = 's32[1]{0}', space=sflag, size = 0x4, scoped, tag = 'scoped memory for tpu_custom_call.1']
    #allocation10 [shape = 'u8[65536]{0}', space=vmem, size = 0x10000, scoped, tag = 'input window, operand 7, single buffered']
    #allocation11 [shape = 'u8[4096]{0}', space=vmem, size = 0x1000, scoped, tag = 'output window, operand 0, single buffered']
    %15 = vsyncpa [#allocation3], 0
    %16 = vsyncpa [#allocation6], 0
    %17 = vsyncpa [#allocation9], 0
    %18 = vsyncpa [#allocation4], 0
    // Predicated region
    $region2: #{tpu_custom_call.1} parent=1 // pred_check
      _
    $region3: #{tpu_custom_call.1} parent=1 // pred_check_branch
      %20 = sbr.rel (0) target = $region5
    $region4: #{tpu_custom_call.1} parent=1 // pred_region
      %s22 = ssub.s32 128, 128
      %23 = vsyncadd [#allocation3], %s22
      %s25 = sshll.u32 [#allocation2], 4
      %s26 = int_to_ptr.vmem [resolvable:$true] %s25
      %28 = dma.hbm_to_vmem [thread:$0]  %s0, 128, %s26, [#allocation3]
    $region5: #{tpu_custom_call.1} parent=1 // pred_fallthru
      _
    // Predicated region
    $region6: #{tpu_custom_call.1} parent=1 // pred_check
      _
    $region7: #{tpu_custom_call.1} parent=1 // pred_check_branch
      %30 = sbr.rel (0) target = $region9
    $region8: #{tpu_custom_call.1} parent=1 // pred_region
      %s32 = ssub.s32 512, 512
      %33 = vsyncadd [#allocation6], %s32
      %s34 = sshll.u32 [#allocation5], 4
      %s35 = int_to_ptr.vmem [resolvable:$true] %s34
      %40 = dma.hbm_to_vmem [thread:$0]  %s1, 512, %s35, [#allocation6], 128, 128, 8
    $region9: #{tpu_custom_call.1} parent=1 // pred_fallthru
      _
    // Predicated region
    $region10: #{tpu_custom_call.1} parent=1 // pred_check
      _
    $region11: #{tpu_custom_call.1} parent=1 // pred_check_branch
      %42 = sbr.rel (0) target = $region13
    $region12: #{tpu_custom_call.1} parent=1 // pred_region
      _
    $region13: #{tpu_custom_call.1} parent=1 // pred_fallthru
      _
    // Predicated region
    $region14: #{tpu_custom_call.1} parent=1 // pred_check
      _
    $region15: #{tpu_custom_call.1} parent=1 // pred_check_branch
      %44 = sbr.rel (0) target = $region17
    $region16: #{tpu_custom_call.1} parent=1 // pred_region
      %s46 = ssub.s32 4096, 4096
      %47 = vsyncadd [#allocation6], %s46
      %s48 = sshll.u32 [#allocation7], 4
      %s49 = int_to_ptr.vmem [resolvable:$true] %s48
      %54 = dma.hbm_to_vmem [thread:$0]  %s3, 4096, %s49, [#allocation6], 128, 128, 8
    $region17: #{tpu_custom_call.1} parent=1 // pred_fallthru
      _
    // Predicated region
    $region18: #{tpu_custom_call.1} parent=1 // pred_check
      _
    $region19: #{tpu_custom_call.1} parent=1 // pred_check_branch
      %56 = sbr.rel (0) target = $region21
    $region20: #{tpu_custom_call.1} parent=1 // pred_region
      _
    $region21: #{tpu_custom_call.1} parent=1 // pred_fallthru
      _
    // Predicated region
    $region22: #{tpu_custom_call.1} parent=1 // pred_check
      _
    $region23: #{tpu_custom_call.1} parent=1 // pred_check_branch
      %58 = sbr.rel (0) target = $region25
    $region24: #{tpu_custom_call.1} parent=1 // pred_region
      %s60 = ssub.s32 2048, 2048
      %61 = vsyncadd [#allocation9], %s60
      %s62 = sshll.u32 [#allocation8], 4
      %s63 = int_to_ptr.vmem [resolvable:$true] %s62
      %68 = dma.hbm_to_vmem [thread:$0]  %s5, 2048, %s63, [#allocation9], 64, 64, 4
    $region25: #{tpu_custom_call.1} parent=1 // pred_fallthru
      _
    // Predicated region
    $region26: #{tpu_custom_call.1} parent=1 // pred_check
      _
    $region27: #{tpu_custom_call.1} parent=1 // pred_check_branch
      %70 = sbr.rel (0) target = $region29
    $region28: #{tpu_custom_call.1} parent=1 // pred_region
      _
    $region29: #{tpu_custom_call.1} parent=1 // pred_fallthru
      _
    // Predicated region
    $region30: #{tpu_custom_call.1} parent=1 // pred_check
      _
    $region31: #{tpu_custom_call.1} parent=1 // pred_check_branch
      %72 = sbr.rel (0) target = $region33
    $region32: #{tpu_custom_call.1} parent=1 // pred_region
      %s74 = ssub.s32 2048, 2048
      %75 = vsyncadd [#allocation9], %s74
      %s76 = sshll.u32 [#allocation10], 4
      %s77 = int_to_ptr.vmem [resolvable:$true] %s76
      %82 = dma.hbm_to_vmem [thread:$0]  %s7, 2048, %s77, [#allocation9], 128, 128, 8
    $region33: #{tpu_custom_call.1} parent=1 // pred_fallthru
      _
    // Predicated region
    $region34: #{tpu_custom_call.1} parent=1 // pred_check
      _
    $region35: #{tpu_custom_call.1} parent=1 // pred_check_branch
      %84 = sbr.rel (0) target = $region37
    $region36: #{tpu_custom_call.1} parent=1 // pred_region
      _
    $region37: #{tpu_custom_call.1} parent=1 // pred_fallthru
      _
    // Predicated region
    $region38: #{tpu_custom_call.1} parent=1 // pred_check
      _
    $region39: #{tpu_custom_call.1} parent=1 // pred_check_branch
      %86 = sbr.rel (0) target = $region41
    $region40: #{tpu_custom_call.1} parent=1 // pred_region
      _
    $region41: #{tpu_custom_call.1} parent=1 // pred_fallthru
      _
    // Predicated region
    $region42: #{tpu_custom_call.1} parent=1 // pred_check
      _
    $region43: #{tpu_custom_call.1} parent=1 // pred_check_branch
      %88 = sbr.rel (0) target = $region45
    $region44: #{tpu_custom_call.1} parent=1 // pred_region
      %89 = dma.done [#allocation3], 128
    $region45: #{tpu_custom_call.1} parent=1 // pred_fallthru
      _
    // Predicated region
    $region46: #{tpu_custom_call.1} parent=1 // pred_check
      _
    $region47: #{tpu_custom_call.1} parent=1 // pred_check_branch
      %91 = sbr.rel (0) target = $region49
    $region48: #{tpu_custom_call.1} parent=1 // pred_region
      %92 = dma.done [#allocation6], 512
    $region49: #{tpu_custom_call.1} parent=1 // pred_fallthru
      _
    // Predicated region
    $region50: #{tpu_custom_call.1} parent=1 // pred_check
      _
    $region51: #{tpu_custom_call.1} parent=1 // pred_check_branch
      %94 = sbr.rel (0) target = $region53
    $region52: #{tpu_custom_call.1} parent=1 // pred_region
      %95 = dma.done [#allocation6], 4096
    $region53: #{tpu_custom_call.1} parent=1 // pred_fallthru
      _
    // Predicated region
    $region54: #{tpu_custom_call.1} parent=1 // pred_check
      _
    $region55: #{tpu_custom_call.1} parent=1 // pred_check_branch
      %97 = sbr.rel (0) target = $region57
    $region56: #{tpu_custom_call.1} parent=1 // pred_region
      %98 = dma.done [#allocation9], 2048
    $region57: #{tpu_custom_call.1} parent=1 // pred_fallthru
      _
    // Predicated region
    $region58: #{tpu_custom_call.1} parent=1 // pred_check
      _
    $region59: #{tpu_custom_call.1} parent=1 // pred_check_branch
      %100 = sbr.rel (0) target = $region61
    $region60: #{tpu_custom_call.1} parent=1 // pred_region
      %101 = dma.done [#allocation9], 2048
    $region61: #{tpu_custom_call.1} parent=1 // pred_fallthru
      _
    %v103 = vld [vmem:[#allocation2] sm:$0xff]
    %v104 = vpack.c.bf16 %v103, %v103
    %v105 = vld [vmem:[#allocation5] sm:$0xff]
    %v106 = vld [vmem:[#allocation5 + $0x8] sm:$0xff]
    %v107 = vld [vmem:[#allocation5 + $0x10] sm:$0xff]
    %v108 = vld [vmem:[#allocation5 + $0x18] sm:$0xff]
    %v109 = vld [vmem:[%s2] sm:$0x3]
    %v111 = vlaneseq
    %v112 = vshrl.u32 %v111, 7
    %v113 = vsub.s32 0, %v112
    %v114 = vrot.slane %v109, %v113
    %v115 = vlaneseq
    %v116 = vshrl.u32 %v115, 7
    %v117 = vsub.s32 1, %v116
    %v118 = vrot.slane %v109, %v117
    %v125 = vunpack.c.l.b16 %v105
    %v126 = vunpack.c.h.b16 %v105
    %v127 = vunpack.c.l.b16 %v106
    %v128 = vunpack.c.h.b16 %v106
    %v129 = vunpack.c.l.b16 %v107
    %v130 = vunpack.c.h.b16 %v107
    %v131 = vunpack.c.l.b16 %v108
    %v132 = vunpack.c.h.b16 %v108
    %v133 = vpack.c.b16 %v127, %v125
    %v134 = vpack.c.b16 %v128, %v126
    %v135 = vpack.c.b16 %v131, %v129
    %v136 = vpack.c.b16 %v132, %v130
    %vm141 = vcmask 261120
    %v143 = vsel %vm141, %v104, 0
    %145 = vmatprep.subr.bf16.mxu0 0
    %146 = vmatpush1.bf16.msra.mxu0 0
    %147 = vmatprep.subr.bf16.mxu0 0
    %148 = vmatpush1.bf16.msra.mxu0 0
    %149 = vmatprep.subr.bf16.mxu0 0
    %150 = vmatpush1.bf16.msra.mxu0 0
    %151 = vmatprep.subr.bf16.mxu0 0
    %152 = vmatpush1.bf16.msra.mxu0 0
    %153 = vmatprep.subr.bf16.mxu0 0
    %154 = vmatpush1.bf16.msra.mxu0 0
    %155 = vmatprep.subr.bf16.mxu0 0
    %156 = vmatpush1.bf16.msra.mxu0 0
    %157 = vmatprep.subr.bf16.mxu0 %v136
    %158 = vmatpush1.bf16.msra.mxu0 %v135
    %159 = vmatprep.subr.bf16.mxu0 %v134
    %160 = vmatpush1.bf16.msra.mxu0 %v133
    %161 = vmatprep.subr.bf16.mxu0 0
    %162 = vmatpush2.bf16.msra.mxu0 0
    %163 = vmatprep.subr.bf16.mxu0 0
    %164 = vmatpush2.bf16.msra.mxu0 0
    %165 = vmatprep.subr.bf16.mxu0 0
    %166 = vmatpush2.bf16.msra.mxu0 0
    %167 = vmatprep.subr.bf16.mxu0 0
    %168 = vmatpush2.bf16.msra.mxu0 0
    %169 = vmatprep.subr.bf16.mxu0 0
    %170 = vmatpush2.bf16.msra.mxu0 0
    %171 = vmatprep.subr.bf16.mxu0 0
    %172 = vmatpush2.bf16.msra.mxu0 0
    %173 = vmatprep.subr.bf16.mxu0 0
    %174 = vmatpush2.bf16.msra.mxu0 0
    %175 = vmatprep.subr.bf16.mxu0 0
    %176 = vmatpush2.bf16.msra.mxu0 0
    %177 = vmatprep.mubr.bf16.mxu0 0
    %178 = vmatmul.mubr.bf16.gmra.mxu0 %v143
    %v179 = vpop.f32.mrf.mxu0
    %v180 = vadd.f32 %v114, %v179
    %v181 = vpop.f32.mrf.mxu0
    %v182 = vadd.f32 %v118, %v181
    %v183 = vpop.f32.mrf.mxu0
    %v184 = vpop.f32.mrf.mxu0
    %185 = vdwg.mxu0
    %v186 = vmax.f32 %v180, 0.0
    %v187 = vmax.f32 %v182, 0.0
    %v188 = vpack.c.bf16 %v186, %v186
    %v189 = vpack.c.bf16 %v187, %v187
    %v190 = vld [vmem:[#allocation7] sm:$0xff]
    %v191 = vld [vmem:[#allocation7 + $0x8] sm:$0xff]
    %v192 = vld [vmem:[#allocation7 + $0x10] sm:$0xff]
    %v193 = vld [vmem:[#allocation7 + $0x18] sm:$0xff]
    %v194 = vld [vmem:[#allocation7 + $0x20] sm:$0xff]
    %v195 = vld [vmem:[#allocation7 + $0x28] sm:$0xff]
    %v196 = vld [vmem:[#allocation7 + $0x30] sm:$0xff]
    %v197 = vld [vmem:[#allocation7 + $0x38] sm:$0xff]
    %v198 = vld [vmem:[#allocation7 + $0x40] sm:$0xff]
    %v199 = vld [vmem:[#allocation7 + $0x48] sm:$0xff]
    %v200 = vld [vmem:[#allocation7 + $0x50] sm:$0xff]
    %v201 = vld [vmem:[#allocation7 + $0x58] sm:$0xff]
    %v202 = vld [vmem:[#allocation7 + $0x60] sm:$0xff]
    %v203 = vld [vmem:[#allocation7 + $0x68] sm:$0xff]
    %v204 = vld [vmem:[#allocation7 + $0x70] sm:$0xff]
    %v205 = vld [vmem:[#allocation7 + $0x78] sm:$0xff]
    %v206 = vld [vmem:[#allocation7 + $0x80] sm:$0xff]
    %v207 = vld [vmem:[#allocation7 + $0x88] sm:$0xff]
    %v208 = vld [vmem:[#allocation7 + $0x90] sm:$0xff]
    %v209 = vld [vmem:[#allocation7 + $0x98] sm:$0xff]
    %v210 = vld [vmem:[#allocation7 + $0xa0] sm:$0xff]
    %v211 = vld [vmem:[#allocation7 + $0xa8] sm:$0xff]
    %v212 = vld [vmem:[#allocation7 + $0xb0] sm:$0xff]
    %v213 = vld [vmem:[#allocation7 + $0xb8] sm:$0xff]
    %v214 = vld [vmem:[#allocation7 + $0xc0] sm:$0xff]
    %v215 = vld [vmem:[#allocation7 + $0xc8] sm:$0xff]
    %v216 = vld [vmem:[#allocation7 + $0xd0] sm:$0xff]
    %v217 = vld [vmem:[#allocation7 + $0xd8] sm:$0xff]
    %v218 = vld [vmem:[#allocation7 + $0xe0] sm:$0xff]
    %v219 = vld [vmem:[#allocation7 + $0xe8] sm:$0xff]
    %v220 = vld [vmem:[#allocation7 + $0xf0] sm:$0xff]
    %v221 = vld [vmem:[#allocation7 + $0xf8] sm:$0xff]
    %v222 = vld [vmem:[%s4] sm:$0x3]
    %v224 = vlaneseq
    %v225 = vshrl.u32 %v224, 7
    %v226 = vsub.s32 0, %v225
    %v227 = vrot.slane %v222, %v226
    %v228 = vlaneseq
    %v229 = vshrl.u32 %v228, 7
    %v230 = vsub.s32 1, %v229
    %v231 = vrot.slane %v222, %v230
    %v266 = vunpack.c.l.b16 %v190
    %v267 = vunpack.c.h.b16 %v190
    %v268 = vunpack.c.l.b16 %v191
    %v269 = vunpack.c.h.b16 %v191
    %v270 = vunpack.c.l.b16 %v192
    %v271 = vunpack.c.h.b16 %v192
    %v272 = vunpack.c.l.b16 %v193
    %v273 = vunpack.c.h.b16 %v193
    %v274 = vunpack.c.l.b16 %v194
    %v275 = vunpack.c.h.b16 %v194
    %v276 = vunpack.c.l.b16 %v195
    %v277 = vunpack.c.h.b16 %v195
    %v278 = vunpack.c.l.b16 %v196
    %v279 = vunpack.c.h.b16 %v196
    %v280 = vunpack.c.l.b16 %v197
    %v281 = vunpack.c.h.b16 %v197
    %v282 = vunpack.c.l.b16 %v198
    %v283 = vunpack.c.h.b16 %v198
    %v284 = vunpack.c.l.b16 %v199
    %v285 = vunpack.c.h.b16 %v199
    %v286 = vunpack.c.l.b16 %v200
    %v287 = vunpack.c.h.b16 %v200
    %v288 = vunpack.c.l.b16 %v201
    %v289 = vunpack.c.h.b16 %v201
    %v290 = vunpack.c.l.b16 %v202
    %v291 = vunpack.c.h.b16 %v202
    %v292 = vunpack.c.l.b16 %v203
    %v293 = vunpack.c.h.b16 %v203
    %v294 = vunpack.c.l.b16 %v204
    %v295 = vunpack.c.h.b16 %v204
    %v296 = vunpack.c.l.b16 %v205
    %v297 = vunpack.c.h.b16 %v205
    %v298 = vunpack.c.l.b16 %v206
    %v299 = vunpack.c.h.b16 %v206
    %v300 = vunpack.c.l.b16 %v207
    %v301 = vunpack.c.h.b16 %v207
    %v302 = vunpack.c.l.b16 %v208
    %v303 = vunpack.c.h.b16 %v208
    %v304 = vunpack.c.l.b16 %v209
    %v305 = vunpack.c.h.b16 %v209
    %v306 = vunpack.c.l.b16 %v210
    %v307 = vunpack.c.h.b16 %v210
    %v308 = vunpack.c.l.b16 %v211
    %v309 = vunpack.c.h.b16 %v211
    %v310 = vunpack.c.l.b16 %v212
    %v311 = vunpack.c.h.b16 %v212
    %v312 = vunpack.c.l.b16 %v213
    %v313 = vunpack.c.h.b16 %v213
    %v314 = vunpack.c.l.b16 %v214
    %v315 = vunpack.c.h.b16 %v214
    %v316 = vunpack.c.l.b16 %v215
    %v317 = vunpack.c.h.b16 %v215
    %v318 = vunpack.c.l.b16 %v216
    %v319 = vunpack.c.h.b16 %v216
    %v320 = vunpack.c.l.b16 %v217
    %v321 = vunpack.c.h.b16 %v217
    %v322 = vunpack.c.l.b16 %v218
    %v323 = vunpack.c.h.b16 %v218
    %v324 = vunpack.c.l.b16 %v219
    %v325 = vunpack.c.h.b16 %v219
    %v326 = vunpack.c.l.b16 %v220
    %v327 = vunpack.c.h.b16 %v220
    %v328 = vunpack.c.l.b16 %v221
    %v329 = vunpack.c.h.b16 %v221
    %v330 = vpack.c.b16 %v268, %v266
    %v331 = vpack.c.b16 %v269, %v267
    %v332 = vpack.c.b16 %v272, %v270
    %v333 = vpack.c.b16 %v273, %v271
    %v334 = vpack.c.b16 %v276, %v274
    %v335 = vpack.c.b16 %v277, %v275
    %v336 = vpack.c.b16 %v280, %v278
    %v337 = vpack.c.b16 %v281, %v279
    %v338 = vpack.c.b16 %v284, %v282
    %v339 = vpack.c.b16 %v285, %v283
    %v340 = vpack.c.b16 %v288, %v286
    %v341 = vpack.c.b16 %v289, %v287
    %v342 = vpack.c.b16 %v292, %v290
    %v343 = vpack.c.b16 %v293, %v291
    %v344 = vpack.c.b16 %v296, %v294
    %v345 = vpack.c.b16 %v297, %v295
    %v346 = vpack.c.b16 %v300, %v298
    %v347 = vpack.c.b16 %v301, %v299
    %v348 = vpack.c.b16 %v304, %v302
    %v349 = vpack.c.b16 %v305, %v303
    %v350 = vpack.c.b16 %v308, %v306
    %v351 = vpack.c.b16 %v309, %v307
    %v352 = vpack.c.b16 %v312, %v310
    %v353 = vpack.c.b16 %v313, %v311
    %v354 = vpack.c.b16 %v316, %v314
    %v355 = vpack.c.b16 %v317, %v315
    %v356 = vpack.c.b16 %v320, %v318
    %v357 = vpack.c.b16 %v321, %v319
    %v358 = vpack.c.b16 %v324, %v322
    %v359 = vpack.c.b16 %v325, %v323
    %v360 = vpack.c.b16 %v328, %v326
    %v361 = vpack.c.b16 %v329, %v327
    %394 = vmatprep.subr.bf16.mxu0 %v345
    %395 = vmatpush1.bf16.msra.mxu0 %v344
    %396 = vmatprep.subr.bf16.mxu0 %v343
    %397 = vmatpush1.bf16.msra.mxu0 %v342
    %398 = vmatprep.subr.bf16.mxu0 %v341
    %399 = vmatpush1.bf16.msra.mxu0 %v340
    %400 = vmatprep.subr.bf16.mxu0 %v339
    %401 = vmatpush1.bf16.msra.mxu0 %v338
    %402 = vmatprep.subr.bf16.mxu0 %v337
    %403 = vmatpush1.bf16.msra.mxu0 %v336
    %404 = vmatprep.subr.bf16.mxu0 %v335
    %405 = vmatpush1.bf16.msra.mxu0 %v334
    %406 = vmatprep.subr.bf16.mxu0 %v333
    %407 = vmatpush1.bf16.msra.mxu0 %v332
    %408 = vmatprep.subr.bf16.mxu0 %v331
    %409 = vmatpush1.bf16.msra.mxu0 %v330
    %410 = vmatprep.subr.bf16.mxu0 %v361
    %411 = vmatpush2.bf16.msra.mxu0 %v360
    %412 = vmatprep.subr.bf16.mxu0 %v359
    %413 = vmatpush2.bf16.msra.mxu0 %v358
    %414 = vmatprep.subr.bf16.mxu0 %v357
    %415 = vmatpush2.bf16.msra.mxu0 %v356
    %416 = vmatprep.subr.bf16.mxu0 %v355
    %417 = vmatpush2.bf16.msra.mxu0 %v354
    %418 = vmatprep.subr.bf16.mxu0 %v353
    %419 = vmatpush2.bf16.msra.mxu0 %v352
    %420 = vmatprep.subr.bf16.mxu0 %v351
    %421 = vmatpush2.bf16.msra.mxu0 %v350
    %422 = vmatprep.subr.bf16.mxu0 %v349
    %423 = vmatpush2.bf16.msra.mxu0 %v348
    %424 = vmatprep.subr.bf16.mxu0 %v347
    %425 = vmatpush2.bf16.msra.mxu0 %v346
    %426 = vmatprep.mubr.bf16.mxu0 %v189
    %427 = vmatmul.mubr.bf16.gmra.mxu0 %v188
    %v428 = vpop.f32.mrf.mxu0
    %v429 = vadd.f32 %v227, %v428
    %v430 = vpop.f32.mrf.mxu0
    %v431 = vadd.f32 %v231, %v430
    %v432 = vpop.f32.mrf.mxu0
    %v433 = vpop.f32.mrf.mxu0
    %434 = vdwg.mxu0
    %v435 = vmax.f32 %v429, 0.0
    %v436 = vmax.f32 %v431, 0.0
    %v437 = vpack.c.bf16 %v435, %v435
    %v438 = vpack.c.bf16 %v436, %v436
    %v439 = vld [vmem:[#allocation8] sm:$0xf]
    %v440 = vld [vmem:[#allocation8 + $0x4] sm:$0xf]
    %v441 = vld [vmem:[#allocation8 + $0x8] sm:$0xf]
    %v442 = vld [vmem:[#allocation8 + $0xc] sm:$0xf]
    %v443 = vld [vmem:[#allocation8 + $0x10] sm:$0xf]
    %v444 = vld [vmem:[#allocation8 + $0x14] sm:$0xf]
    %v445 = vld [vmem:[#allocation8 + $0x18] sm:$0xf]
    %v446 = vld [vmem:[#allocation8 + $0x1c] sm:$0xf]
    %v447 = vld [vmem:[#allocation8 + $0x20] sm:$0xf]
    %v448 = vld [vmem:[#allocation8 + $0x24] sm:$0xf]
    %v449 = vld [vmem:[#allocation8 + $0x28] sm:$0xf]
    %v450 = vld [vmem:[#allocation8 + $0x2c] sm:$0xf]
    %v451 = vld [vmem:[#allocation8 + $0x30] sm:$0xf]
    %v452 = vld [vmem:[#allocation8 + $0x34] sm:$0xf]
    %v453 = vld [vmem:[#allocation8 + $0x38] sm:$0xf]
    %v454 = vld [vmem:[#allocation8 + $0x3c] sm:$0xf]
    %v455 = vld [vmem:[#allocation8 + $0x40] sm:$0xf]
    %v456 = vld [vmem:[#allocation8 + $0x44] sm:$0xf]
    %v457 = vld [vmem:[#allocation8 + $0x48] sm:$0xf]
    %v458 = vld [vmem:[#allocation8 + $0x4c] sm:$0xf]
    %v459 = vld [vmem:[#allocation8 + $0x50] sm:$0xf]
    %v460 = vld [vmem:[#allocation8 + $0x54] sm:$0xf]
    %v461 = vld [vmem:[#allocation8 + $0x58] sm:$0xf]
    %v462 = vld [vmem:[#allocation8 + $0x5c] sm:$0xf]
    %v463 = vld [vmem:[#allocation8 + $0x60] sm:$0xf]
    %v464 = vld [vmem:[#allocation8 + $0x64] sm:$0xf]
    %v465 = vld [vmem:[#allocation8 + $0x68] sm:$0xf]
    %v466 = vld [vmem:[#allocation8 + $0x6c] sm:$0xf]
    %v467 = vld [vmem:[#allocation8 + $0x70] sm:$0xf]
    %v468 = vld [vmem:[#allocation8 + $0x74] sm:$0xf]
    %v469 = vld [vmem:[#allocation8 + $0x78] sm:$0xf]
    %v470 = vld [vmem:[#allocation8 + $0x7c] sm:$0xf]
    %v471 = vld [vmem:[%s6] sm:$0x1]
    %v473 = vlaneseq
    %v474 = vshrl.u32 %v473, 7
    %v475 = vsub.s32 0, %v474
    %v476 = vrot.slane %v471, %v475
    %v510 = vunpack.c.l.b16 %v439
    %v511 = vunpack.c.l.b16 %v440
    %v512 = vunpack.c.l.b16 %v441
    %v513 = vunpack.c.l.b16 %v442
    %v514 = vunpack.c.l.b16 %v443
    %v515 = vunpack.c.l.b16 %v444
    %v516 = vunpack.c.l.b16 %v445
    %v517 = vunpack.c.l.b16 %v446
    %v518 = vunpack.c.l.b16 %v447
    %v519 = vunpack.c.l.b16 %v448
    %v520 = vunpack.c.l.b16 %v449
    %v521 = vunpack.c.l.b16 %v450
    %v522 = vunpack.c.l.b16 %v451
    %v523 = vunpack.c.l.b16 %v452
    %v524 = vunpack.c.l.b16 %v453
    %v525 = vunpack.c.l.b16 %v454
    %v526 = vunpack.c.l.b16 %v455
    %v527 = vunpack.c.l.b16 %v456
    %v528 = vunpack.c.l.b16 %v457
    %v529 = vunpack.c.l.b16 %v458
    %v530 = vunpack.c.l.b16 %v459
    %v531 = vunpack.c.l.b16 %v460
    %v532 = vunpack.c.l.b16 %v461
    %v533 = vunpack.c.l.b16 %v462
    %v534 = vunpack.c.l.b16 %v463
    %v535 = vunpack.c.l.b16 %v464
    %v536 = vunpack.c.l.b16 %v465
    %v537 = vunpack.c.l.b16 %v466
    %v538 = vunpack.c.l.b16 %v467
    %v539 = vunpack.c.l.b16 %v468
    %v540 = vunpack.c.l.b16 %v469
    %v541 = vunpack.c.l.b16 %v470
    %v542 = vpack.c.b16 %v511, %v510
    %v543 = vpack.c.b16 %v513, %v512
    %v544 = vpack.c.b16 %v515, %v514
    %v545 = vpack.c.b16 %v517, %v516
    %v546 = vpack.c.b16 %v519, %v518
    %v547 = vpack.c.b16 %v521, %v520
    %v548 = vpack.c.b16 %v523, %v522
    %v549 = vpack.c.b16 %v525, %v524
    %v550 = vpack.c.b16 %v527, %v526
    %v551 = vpack.c.b16 %v529, %v528
    %v552 = vpack.c.b16 %v531, %v530
    %v553 = vpack.c.b16 %v533, %v532
    %v554 = vpack.c.b16 %v535, %v534
    %v555 = vpack.c.b16 %v537, %v536
    %v556 = vpack.c.b16 %v539, %v538
    %v557 = vpack.c.b16 %v541, %v540
    %574 = vmatprep.subr.bf16.mxu0 0
    %575 = vmatpush1.bf16.msra.mxu0 %v549
    %576 = vmatprep.subr.bf16.mxu0 0
    %577 = vmatpush1.bf16.msra.mxu0 %v548
    %578 = vmatprep.subr.bf16.mxu0 0
    %579 = vmatpush1.bf16.msra.mxu0 %v547
    %580 = vmatprep.subr.bf16.mxu0 0
    %581 = vmatpush1.bf16.msra.mxu0 %v546
    %582 = vmatprep.subr.bf16.mxu0 0
    %583 = vmatpush1.bf16.msra.mxu0 %v545
    %584 = vmatprep.subr.bf16.mxu0 0
    %585 = vmatpush1.bf16.msra.mxu0 %v544
    %586 = vmatprep.subr.bf16.mxu0 0
    %587 = vmatpush1.bf16.msra.mxu0 %v543
    %588 = vmatprep.subr.bf16.mxu0 0
    %589 = vmatpush1.bf16.msra.mxu0 %v542
    %590 = vmatprep.subr.bf16.mxu0 0
    %591 = vmatpush2.bf16.msra.mxu0 %v557
    %592 = vmatprep.subr.bf16.mxu0 0
    %593 = vmatpush2.bf16.msra.mxu0 %v556
    %594 = vmatprep.subr.bf16.mxu0 0
    %595 = vmatpush2.bf16.msra.mxu0 %v555
    %596 = vmatprep.subr.bf16.mxu0 0
    %597 = vmatpush2.bf16.msra.mxu0 %v554
    %598 = vmatprep.subr.bf16.mxu0 0
    %599 = vmatpush2.bf16.msra.mxu0 %v553
    %600 = vmatprep.subr.bf16.mxu0 0
    %601 = vmatpush2.bf16.msra.mxu0 %v552
    %602 = vmatprep.subr.bf16.mxu0 0
    %603 = vmatpush2.bf16.msra.mxu0 %v551
    %604 = vmatprep.subr.bf16.mxu0 0
    %605 = vmatpush2.bf16.msra.mxu0 %v550
    %606 = vmatprep.mubr.bf16.mxu0 %v438
    %607 = vmatmul.mubr.bf16.gmra.mxu0 %v437
    %v608 = vpop.f32.mrf.mxu0
    %v609 = vadd.f32 %v476, %v608
    %v610 = vpop.f32.mrf.mxu0
    %v611 = vpop.f32.mrf.mxu0
    %v612 = vpop.f32.mrf.mxu0
    %613 = vdwg.mxu0
    %v614 = vmax.f32 %v609, 0.0
    %v615 = vld [vmem:[#allocation10] sm:$0xff]
    %v616 = vld [vmem:[#allocation10 + $0x8] sm:$0xff]
    %v617 = vld [vmem:[#allocation10 + $0x10] sm:$0xff]
    %v618 = vld [vmem:[#allocation10 + $0x18] sm:$0xff]
    %v619 = vld [vmem:[#allocation10 + $0x20] sm:$0xff]
    %v620 = vld [vmem:[#allocation10 + $0x28] sm:$0xff]
    %v621 = vld [vmem:[#allocation10 + $0x30] sm:$0xff]
    %v622 = vld [vmem:[#allocation10 + $0x38] sm:$0xff]
    %v623 = vld [vmem:[#allocation10 + $0x40] sm:$0xff]
    %v624 = vld [vmem:[#allocation10 + $0x48] sm:$0xff]
    %v625 = vld [vmem:[#allocation10 + $0x50] sm:$0xff]
    %v626 = vld [vmem:[#allocation10 + $0x58] sm:$0xff]
    %v627 = vld [vmem:[#allocation10 + $0x60] sm:$0xff]
    %v628 = vld [vmem:[#allocation10 + $0x68] sm:$0xff]
    %v629 = vld [vmem:[#allocation10 + $0x70] sm:$0xff]
    %v630 = vld [vmem:[#allocation10 + $0x78] sm:$0xff]
    %v631 = vld [vmem:[%s8] sm:$0x1]
    %v633 = vlaneseq
    %v634 = vshrl.u32 %v633, 7
    %v635 = vsub.s32 0, %v634
    %v636 = vrot.slane %v631, %v635
    %638 = vmatprep.subr.mxu0 0.0
    %639 = vmatpush1.msra.mxu0 %v630
    %640 = vmatprep.subr.mxu0 0.0
    %641 = vmatpush1.msra.mxu0 %v629
    %642 = vmatprep.subr.mxu0 0.0
    %643 = vmatpush1.msra.mxu0 %v628
    %644 = vmatprep.subr.mxu0 0.0
    %645 = vmatpush1.msra.mxu0 %v627
    %646 = vmatprep.subr.mxu0 0.0
    %647 = vmatpush1.msra.mxu0 %v626
    %648 = vmatprep.subr.mxu0 0.0
    %649 = vmatpush1.msra.mxu0 %v625
    %650 = vmatprep.subr.mxu0 0.0
    %651 = vmatpush1.msra.mxu0 %v624
    %652 = vmatprep.subr.mxu0 0.0
    %653 = vmatpush1.msra.mxu0 %v623
    %654 = vmatprep.subr.mxu0 0.0
    %655 = vmatpush1.msra.mxu0 %v622
    %656 = vmatprep.subr.mxu0 0.0
    %657 = vmatpush1.msra.mxu0 %v621
    %658 = vmatprep.subr.mxu0 0.0
    %659 = vmatpush1.msra.mxu0 %v620
    %660 = vmatprep.subr.mxu0 0.0
    %661 = vmatpush1.msra.mxu0 %v619
    %662 = vmatprep.subr.mxu0 0.0
    %663 = vmatpush1.msra.mxu0 %v618
    %664 = vmatprep.subr.mxu0 0.0
    %665 = vmatpush1.msra.mxu0 %v617
    %666 = vmatprep.subr.mxu0 0.0
    %667 = vmatpush1.msra.mxu0 %v616
    %668 = vmatprep.subr.mxu0 0.0
    %669 = vmatpush1.msra.mxu0 %v615
    %670 = vmatprep.subr.mxu0 0.0
    %671 = vmatpush2.msra.mxu0 0.0
    %672 = vmatprep.subr.mxu0 0.0
    %673 = vmatpush2.msra.mxu0 0.0
    %674 = vmatprep.subr.mxu0 0.0
    %675 = vmatpush2.msra.mxu0 0.0
    %676 = vmatprep.subr.mxu0 0.0
    %677 = vmatpush2.msra.mxu0 0.0
    %678 = vmatprep.subr.mxu0 0.0
    %679 = vmatpush2.msra.mxu0 0.0
    %680 = vmatprep.subr.mxu0 0.0
    %681 = vmatpush2.msra.mxu0 0.0
    %682 = vmatprep.subr.mxu0 0.0
    %683 = vmatpush2.msra.mxu0 0.0
    %684 = vmatprep.subr.mxu0 0.0
    %685 = vmatpush2.msra.mxu0 0.0
    %686 = vmatprep.subr.mxu0 0.0
    %687 = vmatpush2.msra.mxu0 0.0
    %688 = vmatprep.subr.mxu0 0.0
    %689 = vmatpush2.msra.mxu0 0.0
    %690 = vmatprep.subr.mxu0 0.0
    %691 = vmatpush2.msra.mxu0 0.0
    %692 = vmatprep.subr.mxu0 0.0
    %693 = vmatpush2.msra.mxu0 0.0
    %694 = vmatprep.subr.mxu0 0.0
    %695 = vmatpush2.msra.mxu0 0.0
    %696 = vmatprep.subr.mxu0 0.0
    %697 = vmatpush2.msra.mxu0 0.0
    %698 = vmatprep.subr.mxu0 0.0
    %699 = vmatpush2.msra.mxu0 0.0
    %700 = vmatprep.subr.mxu0 0.0
    %701 = vmatpush2.msra.mxu0 0.0
    %702 = vmatprep.mubr.f32.mxu0 0.0
    %703 = vmatmul.mubr.f32.gmra.mxu0 %v614
    %v704 = vpop.f32.mrf.mxu0
    %v705 = vadd.f32 %v636, %v704
    %v706 = vpop.f32.mrf.mxu0
    %707 = vdwg.mxu0
    %709 = vrot.lane.b32.xlu0 %v705, 112
    %v710 = vpop.permute.xlu0 %709
    %v712 = vmul.f32 %v705, %v710
    %714 = vrot.lane.b32.xlu0 %v712, 104
    %v715 = vpop.permute.xlu0 %714
    %vm717 = vcmask 130048
    %v718 = vsel %vm717, %v715, 0.0
    %719 = vadd.xlane.f32.xlu0 %v718
    %v720 = vpop.xlane.xlu0 %719
    %v721 = vld [vmem:[%s9] sm:$0x1]
    %v723 = vlaneseq
    %v724 = vshrl.u32 %v723, 7
    %v725 = vsub.s32 0, %v724
    %v726 = vrot.slane %v721, %v725
    %v728 = vmul.f32 %v720, %v726
    %v729 = vadd.f32 %v705, %v728
    %730 = vst [vmem:[#allocation11] sm:$0xff] %v729
    // Predicated region
    $region62: #{tpu_custom_call.1} parent=1 // pred_check
      _
    $region63: #{tpu_custom_call.1} parent=1 // pred_check_branch
      %732 = sbr.rel (0) target = $region65
    $region64: #{tpu_custom_call.1} parent=1 // pred_region
      %s734 = ssub.s32 128, 128
      %735 = vsyncadd [#allocation4], %s734
      %s737 = sshll.u32 [#allocation11], 4
      %s738 = int_to_ptr.vmem [resolvable:$true] %s737
      %740 = dma.vmem_to_hbm [thread:$0]  %s738, 128, %s10, [#allocation4]
    $region65: #{tpu_custom_call.1} parent=1 // pred_fallthru
      _
    // Predicated region
    $region66: #{tpu_custom_call.1} parent=1 // pred_check
      _
    $region67: #{tpu_custom_call.1} parent=1 // pred_check_branch
      %742 = sbr.rel (0) target = $region69
    $region68: #{tpu_custom_call.1} parent=1 // pred_region
      %743 = dma.done [#allocation4], 128
    $region69: #{tpu_custom_call.1} parent=1 // pred_fallthru
      _
    %744 = vsyncpa [#allocation3], 1
    %745 = vsyncpa [#allocation6], 1
    %746 = vsyncpa [#allocation9], 1
    %747 = vsyncpa [#allocation4], 1

</llo_original>
